<compile_context>
chip_gen: v7x
topology: tpu7x:2x2x1
jax: 0.10.0
libtpu: 0.0.40
codegen_flags: <defaults>
</compile_context>

<pallas_src>
import functools

import jax
import jax.numpy as jnp
from jax import lax
from jax.experimental import pallas as pl
from jax.experimental.pallas import tpu as pltpu


def _cdiv(a, b):
    return -(-a // b)


def _round_up(a, b):
    return _cdiv(a, b) * b


def _vmem_capacity_bytes():
    try:
        info = pltpu.get_tpu_info()
        cap = int(getattr(info, "vmem_capacity_bytes", 0) or 0)
        if cap > 0:
            return cap
    except Exception:
        pass
    return 64 * 1024 * 1024  # conservative default (v7x per-TensorCore VMEM)


def _row_tiles(s, rows_target):
    """Balanced seq tiling: tile rows are a multiple of 8 unless a single full tile."""
    rows_target = max(8, int(rows_target))
    if s <= rows_target:
        return s, 1
    nt = _cdiv(s, rows_target)
    ts = _round_up(_cdiv(s, nt), 8)
    return ts, _cdiv(s, ts)


# ----------------------------- kernels --------------------------------------


def _fused_kernel(x_ref, scale_ref, o_ref, *, inv_count):
    # x_ref / o_ref: (S, D) for one sample; scale_ref: (S, D) (constant block
    # index -> DMA'd from HBM once and reused across the batch grid axis).
    x = x_ref[...]
    xf = x.astype(jnp.float32)
    lane_ssq = jnp.sum(xf * xf, axis=0, keepdims=True)            # (1, D) f32
    ms = jnp.sum(lane_ssq, axis=-1, keepdims=True) * inv_count    # (1, 1) f32
    inv = lax.rsqrt(ms)                     # no eps (matches the PyTorch module)
    # Product stays in the input dtype; the f32 `inv` promotes only the final
    # multiply, then a single cast to the output dtype.
    o_ref[...] = ((x * scale_ref[...]) * inv).astype(o_ref.dtype)


def _sumsq_kernel(x_ref, ssq_ref, *, ts, seq_len, mask_tail):
    # x_ref: (TS, D) seq tile of one sample; ssq_ref: (1, D) f32 lane partials,
    # resident across the 'arbitrary' seq-tile grid axis.
    @pl.when(pl.program_id(1) == 0)
    def _():
        ssq_ref[...] = jnp.zeros_like(ssq_ref)

    x = x_ref[...].astype(jnp.float32)
    if mask_tail:
        t = pl.program_id(1)
        row = lax.broadcasted_iota(jnp.int32, x.shape, 0)
        x = jnp.where(row < (seq_len - t * ts), x, 0.0)  # zero the ragged tail
    ssq_ref[...] += jnp.sum(x * x, axis=0, keepdims=True)


def _apply_kernel(x_ref, scale_ref, ssq_ref, o_ref, *, inv_count):
    # x_ref / scale_ref / o_ref: (TS, D); ssq_ref: (1, D) f32 lane partials.
    ms = jnp.sum(ssq_ref[...], axis=-1, keepdims=True) * inv_count  # (1, 1) f32
    inv = lax.rsqrt(ms)
    o_ref[...] = ((x_ref[...] * scale_ref[...]) * inv).astype(o_ref.dtype)


# ----------------------------- wrapper ---------------------------------------


def rmsnorm(x, scale, *,
            pass1_block_bytes=4 * 1024 * 1024,
            pass2_block_bytes=2 * 1024 * 1024,
            force_two_pass=False):
    """x: (B, S, D); scale: (max_seq, D) -- only scale[:S, :] is used."""
    B, S, D = x.shape
    assert scale.shape[0] >= S and scale.shape[1] == D
    N = S * D
    inv_count = 1.0 / float(N)

    # Slice + cast scale once in the wrapper: single HBM stream in x's dtype,
    # no per-tile casts inside the kernels.
    scale_s = scale[:S, :].astype(x.dtype)

    itemsize = jnp.dtype(x.dtype).itemsize
    lane_d = _round_up(D, 128)          # VMEM lane padding (budgeting only)
    row_vmem = lane_d * itemsize
    sample_vmem = S * row_vmem

    vmem_cap = _vmem_capacity_bytes()

    # ---------------- fused single-read path --------------------------------
    # x + out double-buffered + scale buffers + f32 temps for the reduction.
    fused_working = 6 * sample_vmem + 2 * S * lane_d * 4
    if (not force_two_pass) and fused_working <= vmem_cap // 2:
        vmem_limit = min(int(0.85 * vmem_cap),
                         max(fused_working + (8 << 20), 32 << 20))
        return pl.pallas_call(
            functools.partial(_fused_kernel, inv_count=inv_count),
            out_shape=jax.ShapeDtypeStruct((B, S, D), x.dtype),
            grid=(B,),
            in_specs=[
                pl.BlockSpec((None, S, D), lambda b: (b, 0, 0)),
                pl.BlockSpec((S, D), lambda b: (0, 0)),   # constant -> DMA'd once
            ],
            out_specs=pl.BlockSpec((None, S, D), lambda b: (b, 0, 0)),
            compiler_params=pltpu.CompilerParams(
                dimension_semantics=("parallel",),
                vmem_limit_bytes=vmem_limit,
            ),
            cost_estimate=pl.CostEstimate(
                flops=5 * B * N,
                transcendentals=B,
                bytes_accessed=(2 * B * N + N) * itemsize,
            ),
        )(x, scale_s)

    # ---------------- two-pass tiled fallback --------------------------------
    two_pass_vmem_limit = min(int(0.75 * vmem_cap), 48 << 20)

    # Pass 1: per-sample sum of squares -> (B, 1, D) f32 lane partials.
    ts1, nt1 = _row_tiles(S, pass1_block_bytes // row_vmem)
    ssq = pl.pallas_call(
        functools.partial(_sumsq_kernel, ts=ts1, seq_len=S,
                          mask_tail=(S % ts1 != 0)),
        out_shape=jax.ShapeDtypeStruct((B, 1, D), jnp.float32),
        grid=(B, nt1),
        in_specs=[pl.BlockSpec((None, ts1, D), lambda b, t: (b, t, 0))],
        out_specs=pl.BlockSpec((None, 1, D), lambda b, t: (b, 0, 0)),
        compiler_params=pltpu.CompilerParams(
            dimension_semantics=("parallel", "arbitrary"),
            vmem_limit_bytes=two_pass_vmem_limit,
        ),
        cost_estimate=pl.CostEstimate(
            flops=2 * B * N,
            transcendentals=0,
            bytes_accessed=B * N * itemsize + B * D * 4,
        ),
    )(x)

    # Pass 2: out = x * scale * rsqrt(mean(x^2)).  Grid order (seq-tile, batch)
    # keeps scale's block index constant across the inner batch loop so Pallas
    # elides its re-DMA (scale read from HBM once instead of B times).
    ts2, nt2 = _row_tiles(S, pass2_block_bytes // row_vmem)
    out = pl.pallas_call(
        functools.partial(_apply_kernel, inv_count=inv_count),
        out_shape=jax.ShapeDtypeStruct((B, S, D), x.dtype),
        grid=(nt2, B),
        in_specs=[
            pl.BlockSpec((None, ts2, D), lambda t, b: (b, t, 0)),
            pl.BlockSpec((ts2, D), lambda t, b: (t, 0)),
            pl.BlockSpec((None, 1, D), lambda t, b: (b, 0, 0)),
        ],
        out_specs=pl.BlockSpec((None, ts2, D), lambda t, b: (b, t, 0)),
        compiler_params=pltpu.CompilerParams(
            dimension_semantics=("parallel", "parallel"),
            vmem_limit_bytes=two_pass_vmem_limit,
        ),
        cost_estimate=pl.CostEstimate(
            flops=3 * B * N,
            transcendentals=B * nt2,
            bytes_accessed=(2 * B * N + N) * itemsize + B * nt2 * D * 4,
        ),
    )(x, scale_s, ssq)
    return out


def rmsnorm_ref(x, scale):
    B, S, D = x.shape
    xf = x.astype(jnp.float32)
    ff_rms = jnp.linalg.norm(xf.reshape(B, -1), axis=-1) * (S * D) ** (-0.5)
    raw = xf / ff_rms[:, None, None]
    return (scale[:S, :].astype(jnp.float32)[None] * raw).astype(x.dtype)


if __name__ == "__main__":
    k0, k1, k2 = jax.random.split(jax.random.PRNGKey(0), 3)

    # Small shapes consistent with the module: batch=2, seq=8, hidden=32.
    B, S, D = 2, 8, 32
    MAX_SEQ = 16  # layer_shape = (MAX_SEQ, D); forward slices scale[:S, :]
    x = jax.random.normal(k0, (B, S, D), dtype=jnp.float32)
    scale = jnp.ones((MAX_SEQ, D), dtype=jnp.float32)  # module init: ones

    out = jax.block_until_ready(rmsnorm(x, scale))     # exercises fused path
    ref = rmsnorm_ref(x, scale)
    assert out.shape == (B, S, D)
    assert jnp.allclose(out, ref, atol=1e-5, rtol=1e-5)

    # Also exercise the two-pass tiled fallback (incl. ragged last seq tile).
    B2, S2, D2 = 2, 20, 32
    x2 = jax.random.normal(k1, (B2, S2, D2), dtype=jnp.float32)
    scale2 = 1.0 + 0.1 * jax.random.normal(k2, (32, D2), dtype=jnp.float32)
    out2 = jax.block_until_ready(
        rmsnorm(x2, scale2, force_two_pass=True,
                pass1_block_bytes=8 * 128 * 4, pass2_block_bytes=8 * 128 * 4))
    ref2 = rmsnorm_ref(x2, scale2)
    assert out2.shape == (B2, S2, D2)
    assert jnp.allclose(out2, ref2, atol=1e-5, rtol=1e-5)

    print("KERNEL_OK")
</pallas_src>

<mosaic_0001>
module attributes {stable_mosaic.version = 11 : i64} {
  func.func @_fused_kernel(%arg0: i32, %arg1: memref<1x8x32xf32, #tpu.memory_space<vmem>>, %arg2: memref<8x32xf32, #tpu.memory_space<vmem>>, %arg3: memref<1x8x32xf32, #tpu.memory_space<vmem>>) attributes {dimension_semantics = [#tpu.dimension_semantics<parallel>], iteration_bounds = array<i64: 2>, scalar_prefetch = 0 : i64, scratch_operands = 0 : i64, tpu.core_type = #tpu.core_type<tc>, window_params = [{transform_indices = @transform_0, window_bounds = array<i64: 1, 8, 32>}, {pipeline_mode = #tpu.pipeline_mode<synchronous>, transform_indices = @transform_1, window_bounds = array<i64: 8, 32>}, {transform_indices = @transform_2, window_bounds = array<i64: 1, 8, 32>}]} {
    %c0 = arith.constant 0 : index
    %c0_0 = arith.constant 0 : index
    %c0_1 = arith.constant 0 : index
    %0 = vector.load %arg1[%c0, %c0_0, %c0_1] : memref<1x8x32xf32, #tpu.memory_space<vmem>>, vector<1x8x32xf32>
    %1 = vector.shape_cast %0 : vector<1x8x32xf32> to vector<8x32xf32>
    %2 = arith.mulf %1, %1 : vector<8x32xf32>
    %cst = arith.constant dense<0.000000e+00> : vector<32xf32>
    %3 = vector.multi_reduction <add>, %2, %cst [0] : vector<8x32xf32> to vector<32xf32>
    %4 = vector.shape_cast %3 : vector<32xf32> to vector<1x32xf32>
    %cst_2 = arith.constant dense<0.000000e+00> : vector<1xf32>
    %5 = vector.multi_reduction <add>, %4, %cst_2 [1] : vector<1x32xf32> to vector<1xf32>
    %6 = vector.shape_cast %5 : vector<1xf32> to vector<1x1xf32>
    %cst_3 = arith.constant 3.906250e-03 : f32
    %7 = vector.broadcast %cst_3 : f32 to vector<1x1xf32>
    %8 = arith.mulf %6, %7 : vector<1x1xf32>
    %9 = math.rsqrt %8 : vector<1x1xf32>
    %c0_4 = arith.constant 0 : index
    %c0_5 = arith.constant 0 : index
    %10 = vector.load %arg2[%c0_4, %c0_5] : memref<8x32xf32, #tpu.memory_space<vmem>>, vector<8x32xf32>
    %11 = arith.mulf %1, %10 : vector<8x32xf32>
    %12 = vector.broadcast %9 : vector<1x1xf32> to vector<8x32xf32>
    %13 = arith.mulf %11, %12 : vector<8x32xf32>
    %c0_6 = arith.constant 0 : index
    %c0_7 = arith.constant 0 : index
    %c0_8 = arith.constant 0 : index
    %14 = vector.load %arg3[%c0_6, %c0_7, %c0_8] : memref<1x8x32xf32, #tpu.memory_space<vmem>>, vector<1x8x32xf32>
    %15 = vector.shape_cast %14 : vector<1x8x32xf32> to vector<8x32xf32>
    %16 = vector.shape_cast %13 : vector<8x32xf32> to vector<1x8x32xf32>
    tpu.vector_store %arg3[%c0_6, %c0_7, %c0_8], %16 {strides = array<i32>} : memref<1x8x32xf32, #tpu.memory_space<vmem>>, vector<1x8x32xf32>,
    return
  }
  func.func @transform_0(%arg0: i32) -> (i32, i32, i32) {
    %c0_i32 = arith.constant 0 : i32
    %c0_i32_0 = arith.constant 0 : i32
    %c0_i32_1 = arith.constant 0 : i32
    return %arg0, %c0_i32, %c0_i32_0 : i32, i32, i32
  }
  func.func @transform_1(%arg0: i32) -> (i32, i32) {
    %c0_i32 = arith.constant 0 : i32
    %c0_i32_0 = arith.constant 0 : i32
    %c0_i32_1 = arith.constant 0 : i32
    return %c0_i32, %c0_i32_0 : i32, i32
  }
  func.func @transform_2(%arg0: i32) -> (i32, i32, i32) {
    %c0_i32 = arith.constant 0 : i32
    %c0_i32_0 = arith.constant 0 : i32
    %c0_i32_1 = arith.constant 0 : i32
    return %arg0, %c0_i32, %c0_i32_0 : i32, i32, i32
  }
}

</mosaic_0001>

<llo_original>
// kernel: tpu_custom_call.1
$region0: #{tpu_custom_call.1}
  #allocation0 [shape = 'u32[]', space=smem, size = 0x4, offset = 0x4, fixed_abs, tag = 'smem constant byte address 0x4 - core index']
  #allocation1 [shape = 'u32[144,128]{1,0:T(1,128)}', space=vmem, size = 0x12000, scoped, tag = 'internal scratch']
  %s0 = inlined_call_operand.hbm [shape: f32[2,8,32], index: 0, kind: input, shape index: {}]
  %s1 = inlined_call_operand.hbm [shape: f32[8,32], index: 1, kind: input, shape index: {}]
  %s2 = inlined_call_operand.hbm [shape: f32[2,8,32], index: 2, kind: output, shape index: {}]
  %s3 = sld [smem:[#allocation0]]
  $region49: #{tpu_custom_call.1} parent=0
    _
  %s5 = ssub.s32 1, %s3
  %s6 = scalar_select 0, %s5, %s3
  $region1: #{tpu_custom_call.1} parent=0
    #allocation2 [shape = 'u8[8192]{0}', space=vmem, size = 0x2000, scoped, tag = 'input window, operand 0']
    #allocation3 [shape = 's32[2]{0}', space=sflag, size = 0x8, scoped, tag = 'scoped memory for tpu_custom_call.1']
    #allocation4 [shape = 's32[2]{0}', space=sflag, size = 0x8, scoped, tag = 'scoped memory for tpu_custom_call.1']
    #allocation5 [shape = 'u8[4096]{0}', space=vmem, size = 0x1000, scoped, tag = 'input window, operand 1, single buffered']
    #allocation6 [shape = 's32[1]{0}', space=sflag, size = 0x4, scoped, tag = 'scoped memory for tpu_custom_call.1']
    #allocation7 [shape = 'u8[8192]{0}', space=vmem, size = 0x2000, scoped, tag = 'output window, operand 0']
    %7 = vsyncpa [#allocation3], 0
    %s8 = scalar_lea.sflag [#allocation3], 1
    %9 = vsyncpa %s8, 0
    %10 = vsyncpa [#allocation6], 0
    %11 = vsyncpa [#allocation4], 0
    %s12 = scalar_lea.sflag [#allocation4], 1
    %13 = vsyncpa %s12, 0
    loop: start=0, step=1, limit=4
    $region2: #{tpu_custom_call.1} parent=1 // loop_pre_header
      _
    $region3: #{tpu_custom_call.1} parent=1 // loop_header
      %s15 = sphi 0, %s19
      %p16 = scmp.ge.s32.totalorder %s15, 4
      %s25 = sphi 0, %s27
      %s28 = sphi 0, %s25
      %s29 = sphi 0, %s28
      %s45 = sphi 0, %s29
      %s49 = sphi 0, %s49
      %s51 = sphi 0, %s49
      %s52 = sphi 0, %s51
      %s66 = sphi 0, %s52
      %s72 = sphi 0, %s74
      %s75 = sphi 0, %s72
      %s76 = sphi 0, %s75
      %s92 = sphi 0, %s76
    $region4: #{tpu_custom_call.1} parent=1 // loop_header_branch
      %18 = sbr.rel (%p16) target = $region8
    $region5: #{tpu_custom_call.1} parent=1 // loop_body
      %s20 = ssub.s32 %s15, 1
      %s21 = ssub.s32 %s15, 2
      %s22 = sadd.s32 %s15, 1
      %s23 = ssub.s32 %s15, %s22
      %p24 = scmp.eq.s32.totalorder %s23, 0
      %s26 = sadd.s32 %s25, 1
      %s27 = scalar_select %p24, %s25, %s26
      %p30 = pneg %p24
      %p31 = scmp.eq.s32.totalorder %s15, 1
      %p32 = por %p30, %p31
      %p33 = scmp.ne.s32.totalorder %s25, %s28
      %p34 = scmp.eq.s32.totalorder %s15, 0
      %p35 = por %p33, %p34
      %p36 = scmp.ne.s32.totalorder %s25, %s28
      %p37 = scmp.eq.s32.totalorder %s20, 1
      %p38 = por %p36, %p37
      %p39 = scmp.ne.s32.totalorder %s28, %s29
      %p40 = scmp.eq.s32.totalorder %s20, 0
      %p41 = por %p39, %p40
      %p42 = scmp.ne.s32.totalorder %s28, %s29
      %p43 = scmp.eq.s32.totalorder %s21, 1
      %p44 = por %p42, %p43
      %p46 = scmp.ne.s32.totalorder %s29, %s45
      %p47 = scmp.eq.s32.totalorder %s21, 0
      %p48 = por %p46, %p47
      %s50 = sadd.s32 %s49, 1
      %p53 = scmp.eq.s32.totalorder %s15, 1
      %p54 = scmp.ne.s32.totalorder %s49, %s51
      %p55 = scmp.eq.s32.totalorder %s15, 0
      %p56 = por %p54, %p55
      %p57 = scmp.ne.s32.totalorder %s49, %s51
      %p58 = scmp.eq.s32.totalorder %s20, 1
      %p59 = por %p57, %p58
      %p60 = scmp.ne.s32.totalorder %s51, %s52
      %p61 = scmp.eq.s32.totalorder %s20, 0
      %p62 = por %p60, %p61
      %p63 = scmp.ne.s32.totalorder %s51, %s52
      %p64 = scmp.eq.s32.totalorder %s21, 1
      %p65 = por %p63, %p64
      %p67 = scmp.ne.s32.totalorder %s52, %s66
      %p68 = scmp.eq.s32.totalorder %s21, 0
      %p69 = por %p67, %p68
      %s70 = ssub.s32 %s15, %s22
      %p71 = scmp.eq.s32.totalorder %s70, 0
      %s73 = sadd.s32 %s72, 1
      %s74 = scalar_select %p71, %s72, %s73
      %p77 = pneg %p71
      %p78 = scmp.eq.s32.totalorder %s15, 1
      %p79 = por %p77, %p78
      %p80 = scmp.ne.s32.totalorder %s72, %s75
      %p81 = scmp.eq.s32.totalorder %s15, 0
      %p82 = por %p80, %p81
      %p83 = scmp.ne.s32.totalorder %s72, %s75
      %p84 = scmp.eq.s32.totalorder %s20, 1
      %p85 = por %p83, %p84
      %p86 = scmp.ne.s32.totalorder %s75, %s76
      %p87 = scmp.eq.s32.totalorder %s20, 0
      %p88 = por %p86, %p87
      %p89 = scmp.ne.s32.totalorder %s75, %s76
      %p90 = scmp.eq.s32.totalorder %s21, 1
      %p91 = por %p89, %p90
      %p93 = scmp.ne.s32.totalorder %s76, %s92
      %p94 = scmp.eq.s32.totalorder %s21, 0
      %p95 = por %p93, %p94
      %p96 = scmp.le.s32.totalorder 1, %s15
      %p97 = scmp.lt.s32.totalorder %s15, 3
      %p98 = pnand %p96, %p97
      %p99 = pneg %p98
      // Predicated region
      $region9: #{tpu_custom_call.1} parent=5 // pred_check
        _
      $region10: #{tpu_custom_call.1} parent=5 // pred_check_branch
        %101 = sbr.rel (%p98) target = $region12
      $region11: #{tpu_custom_call.1} parent=5 // pred_region
        %s102 = ssub.s32 %s15, 1
        // Predicated region
        $region13: #{tpu_custom_call.1} parent=11 // pred_check
          %p103 = pneg %p62
        $region14: #{tpu_custom_call.1} parent=11 // pred_check_branch
          %105 = sbr.rel (%p103) target = $region16
        $region15: #{tpu_custom_call.1} parent=11 // pred_region
          %s107 = ssub.s32 128, 128
          %108 = vsyncadd [#allocation6], %s107
          %s110 = sshll.u32 [#allocation5], 4
          %s111 = int_to_ptr.vmem [resolvable:$true] %s110
          %113 = dma.hbm_to_vmem [thread:$0]  %s1, 128, %s111, [#allocation6]
        $region16: #{tpu_custom_call.1} parent=11 // pred_fallthru
          _
      $region12: #{tpu_custom_call.1} parent=5 // pred_fallthru
        _
      %p114 = scmp.lt.s32.totalorder %s15, 2
      // Predicated region
      $region17: #{tpu_custom_call.1} parent=5 // pred_check
        %p115 = pneg %p114
      $region18: #{tpu_custom_call.1} parent=5 // pred_check_branch
        %117 = sbr.rel (%p115) target = $region20
      $region19: #{tpu_custom_call.1} parent=5 // pred_region
        // Predicated region
        $region21: #{tpu_custom_call.1} parent=19 // pred_check
          %p118 = pneg %p35
        $region22: #{tpu_custom_call.1} parent=19 // pred_check_branch
          %120 = sbr.rel (%p118) target = $region24
        $region23: #{tpu_custom_call.1} parent=19 // pred_region
          %s121 = sand.u32 %s25, 1
          %s122 = scalar_lea.sflag [#allocation3], %s121
          %s123 = sand.u32 %s25, 1
          %s124 = smul.addr %s123, 8
          %s125 = scalar_lea.vmem [#allocation2], %s124
          %s127 = ssub.s32 128, 128
          %128 = vsyncadd %s122, %s127
          %s129 = smul.addr %s15, 128
          %s130 = scalar_lea.hbm %s0, %s129
          %s132 = sshll.u32 %s125, 4
          %s133 = int_to_ptr.vmem [resolvable:$true] %s132
          %135 = dma.hbm_to_vmem [thread:$0]  %s130, 128, %s133, %s122
        $region24: #{tpu_custom_call.1} parent=19 // pred_fallthru
          _
      $region20: #{tpu_custom_call.1} parent=5 // pred_fallthru
        _
      %p136 = scmp.le.s32.totalorder 1, %s15
      %p137 = scmp.lt.s32.totalorder %s15, 3
      %p138 = pnand %p136, %p137
      %p139 = pneg %p138
      // Predicated region
      $region25: #{tpu_custom_call.1} parent=5 // pred_check
        _
      $region26: #{tpu_custom_call.1} parent=5 // pred_check_branch
        %141 = sbr.rel (%p138) target = $region28
      $region27: #{tpu_custom_call.1} parent=5 // pred_region
        %s142 = ssub.s32 %s15, 1
        %s143 = sand.u32 %s28, 1
        %s144 = scalar_lea.sflag [#allocation3], %s143
        %s145 = sand.u32 %s28, 1
        %s146 = smul.addr %s145, 8
        %s147 = scalar_lea.vmem [#allocation2], %s146
        // Predicated region
        $region29: #{tpu_custom_call.1} parent=27 // pred_check
          %p148 = pneg %p41
        $region30: #{tpu_custom_call.1} parent=27 // pred_check_branch
          %150 = sbr.rel (%p148) target = $region32
        $region31: #{tpu_custom_call.1} parent=27 // pred_region
          %151 = dma.done %s144, 128
        $region32: #{tpu_custom_call.1} parent=27 // pred_fallthru
          _
        // Predicated region
        $region33: #{tpu_custom_call.1} parent=27 // pred_check
          %p152 = pneg %p62
        $region34: #{tpu_custom_call.1} parent=27 // pred_check_branch
          %154 = sbr.rel (%p152) target = $region36
        $region35: #{tpu_custom_call.1} parent=27 // pred_region
          %155 = dma.done [#allocation6], 128
        $region36: #{tpu_custom_call.1} parent=27 // pred_fallthru
          _
        %s156 = sand.u32 %s28, 1
        %s157 = scalar_lea.sflag [#allocation3], %s156
        %s158 = sand.u32 %s28, 1
        %s159 = smul.addr %s158, 8
        %s160 = scalar_lea.vmem [#allocation2], %s159
        %p161 = pneg %p41
        %p162 = pneg %p38
        %p163 = pneg %p62
        %p164 = pneg %p59
        %p165 = pneg %p88
        %p166 = pneg %p85
        %s167 = sand.u32 %s75, 1
        %s168 = scalar_lea.sflag [#allocation4], %s167
        %s169 = sand.u32 %s75, 1
        %s170 = smul.addr %s169, 8
        %s171 = scalar_lea.vmem [#allocation7], %s170
        %v172 = vld [vmem:[%s147] sm:$0xff]
        %v173 = vmul.f32 %v172, %v172
        %vm174 = vcmask 261120
        %v175 = vsel %vm174, %v173, 0.0
        %v176 = vrot.slane %v175, 4
        %v177 = vadd.f32 %v175, %v176
        %v178 = vrot.slane %v177, 2
        %v179 = vadd.f32 %v177, %v178
        %v180 = vrot.slane %v179, 1
        %v181 = vadd.f32 %v179, %v180
        %v182 = vsel %vm174, %v181, 0.0
        %183 = vadd.xlane.f32.xlu0 %v182
        %v184 = vpop.xlane.xlu0 %183
        %v185 = vmul.f32 %v184, 0.00390625
        %v186 = vrsqrt.pop %v185
        %v187 = vld [vmem:[#allocation5] sm:$0xff]
        %v188 = vmul.f32 %v172, %v187
        %v189 = vmul.f32 %v188, %v186
        %190 = vst.msk [vmem:[%s171] sm:$0xff] %vm174, %v189
        %s191 = sand.u32 %s75, 1
        %s192 = scalar_lea.sflag [#allocation4], %s191
        %s193 = sand.u32 %s75, 1
        %s194 = smul.addr %s193, 8
        %s195 = scalar_lea.vmem [#allocation7], %s194
        // Predicated region
        $region37: #{tpu_custom_call.1} parent=27 // pred_check
          %p196 = pneg %p85
        $region38: #{tpu_custom_call.1} parent=27 // pred_check_branch
          %198 = sbr.rel (%p196) target = $region40
        $region39: #{tpu_custom_call.1} parent=27 // pred_region
          %s200 = ssub.s32 128, 128
          %201 = vsyncadd %s192, %s200
          %s202 = smul.addr %s20, 128
          %s203 = scalar_lea.hbm %s2, %s202
          %s205 = sshll.u32 %s195, 4
          %s206 = int_to_ptr.vmem [resolvable:$true] %s205
          %208 = dma.vmem_to_hbm [thread:$0]  %s206, 128, %s203, %s192
        $region40: #{tpu_custom_call.1} parent=27 // pred_fallthru
          _
      $region28: #{tpu_custom_call.1} parent=5 // pred_fallthru
        _
      %p209 = scmp.le.s32.totalorder 2, %s15
      // Predicated region
      $region41: #{tpu_custom_call.1} parent=5 // pred_check
        %p210 = pneg %p209
      $region42: #{tpu_custom_call.1} parent=5 // pred_check_branch
        %212 = sbr.rel (%p210) target = $region44
      $region43: #{tpu_custom_call.1} parent=5 // pred_region
        %s213 = ssub.s32 %s15, 2
        // Predicated region
        $region45: #{tpu_custom_call.1} parent=43 // pred_check
          %p214 = pneg %p91
        $region46: #{tpu_custom_call.1} parent=43 // pred_check_branch
          %216 = sbr.rel (%p214) target = $region48
        $region47: #{tpu_custom_call.1} parent=43 // pred_region
          %s217 = sand.u32 %s76, 1
          %s218 = scalar_lea.sflag [#allocation4], %s217
          %s219 = sand.u32 %s76, 1
          %s220 = smul.addr %s219, 8
          %s221 = scalar_lea.vmem [#allocation7], %s220
          %222 = dma.done %s218, 128
        $region48: #{tpu_custom_call.1} parent=43 // pred_fallthru
          _
      $region44: #{tpu_custom_call.1} parent=5 // pred_fallthru
        _
    $region6: #{tpu_custom_call.1} parent=1 // loop_footer
      %s19 = sadd.s32 1, %s15
    $region7: #{tpu_custom_call.1} parent=1 // loop_footer_branch
      %14 = sbr.rel target = $region3
    $region8: #{tpu_custom_call.1} parent=1 // loop_exit
      _
    %223 = vsyncpa [#allocation3], 1
    %s224 = scalar_lea.sflag [#allocation3], 1
    %225 = vsyncpa %s224, 1
    %226 = vsyncpa [#allocation6], 1
    %227 = vsyncpa [#allocation4], 1
    %s228 = scalar_lea.sflag [#allocation4], 1
    %229 = vsyncpa %s228, 1

</llo_original>
